<compile_context>
chip_gen: v7x
topology: tpu7x:2x2x1
jax: 0.10.0
libtpu: 0.0.40
codegen_flags: <defaults>
</compile_context>

<pallas_src>
import numpy as np
import jax
import jax.numpy as jnp
from jax import lax
from jax.experimental import pallas as pl
from jax.experimental.pallas import tpu as pltpu


def _round_up(x, m):
    return ((x + m - 1) // m) * m


def _batch_tiling(B):
    # Batch rides the 128-lane axis inside the CRF kernels, so the lane block dim
    # must be a multiple of 128 or equal to the full padded batch.
    BT = min(128, _round_up(B, 8))
    Bp = _round_up(B, BT)
    return BT, Bp


# ---------------------------------------------------------------------------
# Kernel 1: emissions = classifier(ReLU(mid_linear(seq_out)))
#   tiled/pipelined over rows, f32 streamed in, bf16 MXU inputs, f32 accumulation.
# ---------------------------------------------------------------------------
def _emissions_kernel(x_ref, w1_ref, b1_ref, w2_ref, b2_ref, out_ref):
    x = x_ref[...].astype(jnp.bfloat16)          # cast on the VPU (x streamed as f32)
    # mid_linear: Linear(H -> M) + ReLU (+ Dropout == identity in eval mode)
    h = jnp.dot(x, w1_ref[...], preferred_element_type=jnp.float32) + b1_ref[...]
    h = jnp.maximum(h, 0.0)
    # classifier: Linear(M -> T)
    out_ref[...] = (jnp.dot(h.astype(jnp.bfloat16), w2_ref[...],
                            preferred_element_type=jnp.float32) + b2_ref[...])


def compute_emissions(seq_out, params):
    B, S, H = seq_out.shape
    M = params["w1"].shape[1]
    T = params["w2"].shape[1]
    BS = B * S

    x = seq_out.reshape(BS, H)                   # keep f32: 4 B/elem single HBM read
    w1 = params["w1"].astype(jnp.bfloat16)
    w2 = params["w2"].astype(jnp.bfloat16)

    tile_r = min(512, _round_up(BS, 8))          # big row tile, multiple of 8
    grid = (pl.cdiv(BS, tile_r),)                # partial tail tile handled by Pallas

    em = pl.pallas_call(
        _emissions_kernel,
        out_shape=jax.ShapeDtypeStruct((BS, T), jnp.float32),
        grid_spec=pltpu.PrefetchScalarGridSpec(
            num_scalar_prefetch=0,
            grid=grid,
            in_specs=[
                pl.BlockSpec((tile_r, H), lambda i: (i, 0)),   # x tile (pipelined)
                pl.BlockSpec((H, M), lambda i: (0, 0)),        # w1 resident
                pl.BlockSpec((1, M), lambda i: (0, 0)),        # b1 resident
                pl.BlockSpec((M, T), lambda i: (0, 0)),        # w2 resident
                pl.BlockSpec((1, T), lambda i: (0, 0)),        # b2 resident
            ],
            out_specs=pl.BlockSpec((tile_r, T), lambda i: (i, 0)),
        ),
        compiler_params=pltpu.CompilerParams(
            dimension_semantics=("parallel",),
            vmem_limit_bytes=32 * 1024 * 1024,
        ),
    )(x, w1, params["b1"], w2, params["b2"])
    return em.reshape(B, S, T)


# ---------------------------------------------------------------------------
# Kernel 2: CRF Viterbi decode (torchcrf.CRF.decode semantics, batch_first)
#   forward pass AND backtrack batched over the lane axis; one batch tile per
#   grid step; score carried in vregs; backpointers in VMEM scratch.
# ---------------------------------------------------------------------------
def _crf_decode_kernel(em_ref, lens_ref, start_ref, end_ref, trans_pn_ref,
                       out_ref, hist_ref):
    S, T, B = em_ref.shape
    iota_t = lax.broadcasted_iota(jnp.int32, (1, T, 1), 1)   # tag on sublanes
    p_iota = lax.broadcasted_iota(jnp.int32, (T, 1, 1), 0)   # prev tag on leading axis

    start = start_ref[...]                                   # (1, T, 1)
    end = end_ref[...]                                       # (1, T, 1)
    trans_pn = trans_pn_ref[...]                             # (Tp, Tn, 1)
    lens = lens_ref[...]                                     # (1, 1, B) int32
    lens_c = jnp.maximum(lens, 1)                            # clamp degenerate masks
    zero_row = jnp.zeros((1, 1, B), jnp.int32)

    # ---- Viterbi forward recurrence (batched over lanes) ----
    def fwd_step(i, score):                                  # score: (1, T, B)
        s_p = score.reshape(T, 1, B)                         # prev tag -> leading axis
        ns = s_p + trans_pn                                  # (Tp, Tn, B)
        nmax = jnp.max(ns, axis=0, keepdims=True)            # (1, Tn, B)
        arg = jnp.min(jnp.where(ns == nmax, p_iota, T),
                      axis=0, keepdims=True).astype(jnp.int32)   # first-max index
        hist_ref[pl.ds(i - 1, 1)] = arg                      # backpointers for time i
        new_score = nmax + em_ref[pl.ds(i, 1)]               # (1, T, B)
        keep = i < lens                                      # prefix mask -> i < L
        return jnp.where(keep, new_score, score)

    score0 = start + em_ref[0:1]                             # (1, T, B)
    score = lax.fori_loop(1, S, fwd_step, score0)

    # ---- best last tag ----
    fin = score + end                                        # (1, T, B)
    fmax = jnp.max(fin, axis=1, keepdims=True)               # (1, 1, B)
    best0 = jnp.min(jnp.where(fin == fmax, iota_t, T),
                    axis=1, keepdims=True).astype(jnp.int32) # (1, 1, B)

    # position S-1 is only reached by rows with full length
    last_row = jnp.where((S - 1) == (lens_c - 1), best0, zero_row)
    out_ref[pl.ds(S - 1, 1), :] = last_row.reshape(1, B)

    # ---- backtrack (batched over lanes; per-lane gather along the tag sublanes) ----
    def bwd_step(k, cur):                                    # cur: (1, 1, B)
        i = S - 2 - k
        hist_i = hist_ref[pl.ds(i, 1)]                       # (1, T, B)
        oh_cur = iota_t == cur                               # (1, T, B)
        prev = jnp.sum(jnp.where(oh_cur, hist_i, 0),
                       axis=1, keepdims=True).astype(jnp.int32)  # hist_i[cur]
        active = i < (lens_c - 1)                            # (1, 1, B)
        row = jnp.where(active, prev,
                        jnp.where(i == (lens_c - 1), best0, zero_row))
        out_ref[pl.ds(i, 1), :] = row.reshape(1, B)          # pad beyond length with 0
        return jnp.where(active, prev, cur)

    lax.fori_loop(0, S - 1, bwd_step, best0)


def crf_decode(emissions, attention_masks, params):
    B, S, T = emissions.shape
    BT, Bp = _batch_tiling(B)
    lens = jnp.sum(attention_masks.astype(jnp.int32), axis=1)
    if Bp > B:
        p = Bp - B
        emissions = jnp.pad(emissions, ((0, p), (0, 0), (0, 0)))
        lens = jnp.pad(lens, (0, p))

    emT = jnp.transpose(emissions, (1, 2, 0))                # (S, T, Bp): batch on lanes
    lens3 = lens.reshape(1, 1, Bp).astype(jnp.int32)
    start3 = params["start"].reshape(1, T, 1)
    end3 = params["end"].reshape(1, T, 1)
    trans_pn = params["trans"].reshape(T, T, 1)              # [prev, next, 1]

    nb = Bp // BT
    grid_spec = pltpu.PrefetchScalarGridSpec(
        num_scalar_prefetch=0,
        grid=(nb,),
        in_specs=[
            pl.BlockSpec((S, T, BT), lambda b: (0, 0, b)),
            pl.BlockSpec((1, 1, BT), lambda b: (0, 0, b)),
            pl.BlockSpec((1, T, 1), lambda b: (0, 0, 0)),
            pl.BlockSpec((1, T, 1), lambda b: (0, 0, 0)),
            pl.BlockSpec((T, T, 1), lambda b: (0, 0, 0)),
        ],
        out_specs=pl.BlockSpec((S, BT), lambda b: (0, b)),
        scratch_shapes=[pltpu.VMEM((S, T, BT), jnp.int32)],  # backpointers
    )
    tags_t = pl.pallas_call(
        _crf_decode_kernel,
        out_shape=jax.ShapeDtypeStruct((S, Bp), jnp.int32),
        grid_spec=grid_spec,
        compiler_params=pltpu.CompilerParams(
            dimension_semantics=("parallel",),
            vmem_limit_bytes=32 * 1024 * 1024,
        ),
    )(emT, lens3, start3, end3, trans_pn)
    return jnp.transpose(tags_t, (1, 0))[:B]                 # (B, S)


# ---------------------------------------------------------------------------
# Kernel 3: CRF log-likelihood (torchcrf.CRF.forward, labels branch)
#   batch tile on lanes; numerator fully vectorized; denominator via exact
#   per-step logsumexp with alpha carried in vregs.
# ---------------------------------------------------------------------------
def _crf_llh_kernel(em_ref, mask_ref, lab_ref, labp_ref, lens_ref, pos_ref,
                    start_ref, end_ref, trans_pn_ref, trans_np_ref, out_ref):
    S, T, B = em_ref.shape
    iota_t = lax.broadcasted_iota(jnp.int32, (1, T, 1), 1)

    em = em_ref[...]                                         # (S, T, B)
    mask = mask_ref[...]                                     # (S, 1, B) f32
    lab = lab_ref[...]                                       # (S, 1, B) i32
    labp = labp_ref[...]                                     # (S, 1, B) i32
    lens = lens_ref[...]                                     # (1, 1, B) i32
    pos = pos_ref[...]                                       # (S, 1, 1) i32
    start = start_ref[...]                                   # (1, T, 1)
    end = end_ref[...]                                       # (1, T, 1)
    trans_pn = trans_pn_ref[...]                             # (Tp, Tn, 1)
    trans_np = trans_np_ref[...]                             # (Tn, Tp, 1) == trans.T

    # ---- numerator: score of the given tag path (no serial loop) ----
    oh = (lab == iota_t).astype(jnp.float32)                 # (S, T, B) one-hot of y_i
    ohp = (labp == iota_t).astype(jnp.float32)               # one-hot of y_{i-1}
    em_sel = jnp.sum(oh * em, axis=1, keepdims=True)         # em[i, y_i]      (S,1,B)
    end_sel = jnp.sum(oh * end, axis=1, keepdims=True)       # end[y_i]        (S,1,B)
    start_sel = jnp.sum(oh[0:1] * start, axis=1, keepdims=True)  # start[y_0]  (1,1,B)

    # trans[y_{i-1}, y_i]: static T-term unroll (no T^2-lane gather).
    # TODO(synk): for large T this is better done as oh_prev @ trans on the MXU.
    tr_sel = jnp.zeros_like(em_sel)
    for t in range(T):
        row_val = jnp.sum(ohp * trans_np[t:t + 1], axis=1, keepdims=True)  # trans[y_{i-1}, t]
        tr_sel = tr_sel + row_val * oh[:, t:t + 1, :]

    w_em = jnp.where(pos == 0, 1.0, mask)                    # em[0] unconditional
    w_tr = jnp.where(pos == 0, 0.0, mask)                    # no transition into i=0
    is_last = (pos == lens - 1).astype(jnp.float32)          # picks i = L-1
    per_i = w_em * em_sel + w_tr * tr_sel + is_last * end_sel            # (S,1,B)
    numerator = start_sel + jnp.sum(per_i, axis=0, keepdims=True)        # (1,1,B)

    # ---- denominator: log-partition, exact per-step logsumexp over prev tag ----
    def den_step(i, alpha):                                  # alpha: (1, T, B)
        a_p = alpha.reshape(T, 1, B)                         # prev tag -> leading axis
        ns = a_p + trans_pn                                  # (Tp, Tn, B)
        m = jnp.max(ns, axis=0, keepdims=True)               # (1, Tn, B)
        lse = m + jnp.log(jnp.sum(jnp.exp(ns - m), axis=0, keepdims=True))
        new_alpha = lse + em_ref[pl.ds(i, 1)]                # (1, T, B)
        keep = mask_ref[pl.ds(i, 1)] != 0.0                  # (1, 1, B)
        return jnp.where(keep, new_alpha, alpha)

    alpha0 = start + em[0:1]                                 # (1, T, B)
    alpha = lax.fori_loop(1, S, den_step, alpha0)
    fin = alpha + end                                        # (1, T, B)
    fm = jnp.max(fin, axis=1, keepdims=True)                 # (1, 1, B)
    den = fm + jnp.log(jnp.sum(jnp.exp(fin - fm), axis=1, keepdims=True))

    out_ref[...] = (numerator - den).reshape(1, B)


def crf_log_likelihood(emissions, attention_masks, labels, params):
    B, S, T = emissions.shape
    BT, Bp = _batch_tiling(B)

    mask = attention_masks.astype(jnp.float32)
    labels = labels.astype(jnp.int32)
    lens = jnp.sum(attention_masks.astype(jnp.int32), axis=1)

    if Bp > B:
        p = Bp - B
        emissions = jnp.pad(emissions, ((0, p), (0, 0), (0, 0)))
        mask = jnp.pad(mask, ((0, p), (0, 0)))
        labels = jnp.pad(labels, ((0, p), (0, 0)))
        lens = jnp.pad(lens, (0, p))

    labels_prev = jnp.concatenate([labels[:, :1], labels[:, :-1]], axis=1)

    # time-major, batch on the 128-lane axis
    emT = jnp.transpose(emissions, (1, 2, 0))                # (S, T, Bp)
    maskT = jnp.transpose(mask, (1, 0)).reshape(S, 1, Bp)
    labT = jnp.transpose(labels, (1, 0)).reshape(S, 1, Bp)
    labpT = jnp.transpose(labels_prev, (1, 0)).reshape(S, 1, Bp)
    lens3 = lens.reshape(1, 1, Bp).astype(jnp.int32)
    pos = jnp.arange(S, dtype=jnp.int32).reshape(S, 1, 1)
    start3 = params["start"].reshape(1, T, 1)
    end3 = params["end"].reshape(1, T, 1)
    trans_pn = params["trans"].reshape(T, T, 1)              # [prev, next, 1]
    trans_np = params["trans"].T.reshape(T, T, 1)            # [next, prev, 1]

    nb = Bp // BT
    grid_spec = pltpu.PrefetchScalarGridSpec(
        num_scalar_prefetch=0,
        grid=(nb,),
        in_specs=[
            pl.BlockSpec((S, T, BT), lambda b: (0, 0, b)),
            pl.BlockSpec((S, 1, BT), lambda b: (0, 0, b)),
            pl.BlockSpec((S, 1, BT), lambda b: (0, 0, b)),
            pl.BlockSpec((S, 1, BT), lambda b: (0, 0, b)),
            pl.BlockSpec((1, 1, BT), lambda b: (0, 0, b)),
            pl.BlockSpec((S, 1, 1), lambda b: (0, 0, 0)),
            pl.BlockSpec((1, T, 1), lambda b: (0, 0, 0)),
            pl.BlockSpec((1, T, 1), lambda b: (0, 0, 0)),
            pl.BlockSpec((T, T, 1), lambda b: (0, 0, 0)),
            pl.BlockSpec((T, T, 1), lambda b: (0, 0, 0)),
        ],
        out_specs=pl.BlockSpec((1, BT), lambda b: (0, b)),
    )
    llh = pl.pallas_call(
        _crf_llh_kernel,
        out_shape=jax.ShapeDtypeStruct((1, Bp), jnp.float32),
        grid_spec=grid_spec,
        compiler_params=pltpu.CompilerParams(
            dimension_semantics=("parallel",),
            vmem_limit_bytes=40 * 1024 * 1024,
        ),
    )(emT, maskT, labT, labpT, lens3, pos, start3, end3, trans_pn, trans_np)
    return llh[0, :B]


# ---------------------------------------------------------------------------
# CRFModel.forward equivalent
# ---------------------------------------------------------------------------
def crf_model_forward(seq_out, attention_masks, params, labels=None):
    emissions = compute_emissions(seq_out, params)
    if labels is not None:
        llh = crf_log_likelihood(emissions, attention_masks, labels.astype(jnp.int32), params)
        tokens_loss = -1.0 * jnp.mean(llh)        # torchcrf reduction='mean', negated
        return (tokens_loss,)
    tags = crf_decode(emissions, attention_masks, params)
    return (tags, emissions)


# ---------------------------------------------------------------------------
# Plain-numpy references (for correctness checking only)
# ---------------------------------------------------------------------------
def np_viterbi(em, mask, start, end, trans):
    B, S, T = em.shape
    out = np.zeros((B, S), np.int32)
    for b in range(B):
        L = int(mask[b].sum())
        score = start + em[b, 0]
        history = []
        for i in range(1, S):
            ns = score[:, None] + trans + em[b, i][None, :]
            history.append(ns.argmax(0))
            if mask[b, i]:
                score = ns.max(0)
        score = score + end
        best = int(score.argmax())
        seq = [best]
        for hist in reversed(history[: L - 1]):
            best = int(hist[best])
            seq.append(best)
        seq.reverse()
        out[b, :L] = np.array(seq, np.int32)
    return out


def np_crf_llh(em, labels, mask, start, end, trans):
    B, S, T = em.shape
    out = np.zeros((B,), np.float64)
    for b in range(B):
        L = int(mask[b].sum())
        score = start[labels[b, 0]] + em[b, 0, labels[b, 0]]
        for i in range(1, S):
            if mask[b, i]:
                score += trans[labels[b, i - 1], labels[b, i]] + em[b, i, labels[b, i]]
        score += end[labels[b, L - 1]]
        alpha = start + em[b, 0]
        for i in range(1, S):
            ns = alpha[:, None] + trans + em[b, i][None, :]
            m = ns.max(0)
            nxt = m + np.log(np.exp(ns - m).sum(0))
            if mask[b, i]:
                alpha = nxt
        fin = alpha + end
        mm = fin.max()
        denom = mm + np.log(np.exp(fin - mm).sum())
        out[b] = score - denom
    return out


# ---------------------------------------------------------------------------
if __name__ == "__main__":
    B, S, H, M, T = 2, 8, 32, 128, 8      # batch, seq, bert hidden, mid_linear_dims, num_tags

    key = jax.random.PRNGKey(0)
    k = jax.random.split(key, 8)
    params = dict(
        w1=0.02 * jax.random.normal(k[0], (H, M), jnp.float32),       # mid_linear Linear weight
        b1=jnp.zeros((1, M), jnp.float32),                            # zero-init bias (per _init_weights)
        w2=0.02 * jax.random.normal(k[1], (M, T), jnp.float32),       # classifier weight
        b2=jnp.zeros((1, T), jnp.float32),
        start=jax.random.uniform(k[2], (1, T), jnp.float32, -0.1, 0.1),  # CRF start_transitions
        end=jax.random.uniform(k[3], (1, T), jnp.float32, -0.1, 0.1),    # CRF end_transitions
        trans=jax.random.uniform(k[4], (T, T), jnp.float32, -0.1, 0.1),  # CRF transitions
    )
    loss_weight = jax.random.normal(k[7], (1,), jnp.float32)          # declared by module, unused in forward

    seq_out = jax.random.normal(k[5], (B, S, H), jnp.float32)         # stand-in for bert_outputs[0]
    lengths = jnp.array([S, 5], jnp.int32)
    attention_masks = (jnp.arange(S)[None, :] < lengths[:, None]).astype(jnp.int32)
    labels = jax.random.randint(k[6], (B, S), 0, T, jnp.int32)

    # inference branch (labels=None) -> (decoded_tags, emissions)
    tags, emissions = crf_model_forward(seq_out, attention_masks, params, labels=None)
    jax.block_until_ready((tags, emissions))

    # training branch (labels given) -> (tokens_loss,)
    (loss,) = crf_model_forward(seq_out, attention_masks, params, labels=labels)
    jax.block_until_ready(loss)

    # ---- correctness checks ----
    # emissions reference with matching bf16 MXU-input rounding (computed via XLA)
    x_bf = seq_out.reshape(B * S, H).astype(jnp.bfloat16)
    h_ref = jnp.maximum(
        jnp.dot(x_bf, params["w1"].astype(jnp.bfloat16),
                preferred_element_type=jnp.float32) + params["b1"], 0.0)
    em_ref = (jnp.dot(h_ref.astype(jnp.bfloat16), params["w2"].astype(jnp.bfloat16),
                      preferred_element_type=jnp.float32) + params["b2"]).reshape(B, S, T)
    np.testing.assert_allclose(np.asarray(emissions), np.asarray(em_ref), rtol=1e-3, atol=1e-3)

    em_np = np.asarray(emissions)
    mask_np = np.asarray(attention_masks)
    start_np = np.asarray(params["start"]).reshape(-1)
    end_np = np.asarray(params["end"]).reshape(-1)
    trans_np = np.asarray(params["trans"])

    tags_ref = np_viterbi(em_np, mask_np, start_np, end_np, trans_np)
    assert np.array_equal(np.asarray(tags), tags_ref), (np.asarray(tags), tags_ref)

    llh_ref = np_crf_llh(em_np, np.asarray(labels), mask_np, start_np, end_np, trans_np)
    loss_ref = -float(llh_ref.mean())
    assert abs(float(loss) - loss_ref) < 1e-3, (float(loss), loss_ref)

    print("KERNEL_OK")
</pallas_src>

<mosaic_0001>
module attributes {stable_mosaic.version = 11 : i64} {
  func.func @_emissions_kernel(%arg0: i32, %arg1: memref<16x32xf32, #tpu.memory_space<vmem>>, %arg2: memref<32x128xbf16, #tpu.memory_space<vmem>>, %arg3: memref<1x128xf32, #tpu.memory_space<vmem>>, %arg4: memref<128x8xbf16, #tpu.memory_space<vmem>>, %arg5: memref<1x8xf32, #tpu.memory_space<vmem>>, %arg6: memref<16x8xf32, #tpu.memory_space<vmem>>) attributes {dimension_semantics = [#tpu.dimension_semantics<parallel>], iteration_bounds = array<i64: 1>, scalar_prefetch = 0 : i64, scratch_operands = 0 : i64, tpu.core_type = #tpu.core_type<tc>, window_params = [{transform_indices = @transform_0, window_bounds = array<i64: 16, 32>}, {pipeline_mode = #tpu.pipeline_mode<synchronous>, transform_indices = @transform_1, window_bounds = array<i64: 32, 128>}, {pipeline_mode = #tpu.pipeline_mode<synchronous>, transform_indices = @transform_2, window_bounds = array<i64: 1, 128>}, {pipeline_mode = #tpu.pipeline_mode<synchronous>, transform_indices = @transform_3, window_bounds = array<i64: 128, 8>}, {pipeline_mode = #tpu.pipeline_mode<synchronous>, transform_indices = @transform_4, window_bounds = array<i64: 1, 8>}, {transform_indices = @transform_5, window_bounds = array<i64: 16, 8>}]} {
    %c0 = arith.constant 0 : index
    %c0_0 = arith.constant 0 : index
    %0 = vector.load %arg1[%c0, %c0_0] : memref<16x32xf32, #tpu.memory_space<vmem>>, vector<16x32xf32>
    %1 = arith.truncf %0 : vector<16x32xf32> to vector<16x32xbf16>
    %c0_1 = arith.constant 0 : index
    %c0_2 = arith.constant 0 : index
    %2 = vector.load %arg2[%c0_1, %c0_2] : memref<32x128xbf16, #tpu.memory_space<vmem>>, vector<32x128xbf16>
    %cst = arith.constant dense<0.000000e+00> : vector<16x128xf32>
    %3 = tpu.matmul %1, %2, %cst {dimension_numbers = #tpu.dot_dimension_numbers<[1], [0], [0], [1], [0, 0, 1, 1], [], []>} : vector<16x32xbf16>, vector<32x128xbf16>, vector<16x128xf32> -> vector<16x128xf32>
    %c0_3 = arith.constant 0 : index
    %c0_4 = arith.constant 0 : index
    %4 = vector.load %arg3[%c0_3, %c0_4] : memref<1x128xf32, #tpu.memory_space<vmem>>, vector<1x128xf32>
    %5 = vector.broadcast %4 : vector<1x128xf32> to vector<16x128xf32>
    %6 = arith.addf %3, %5 : vector<16x128xf32>
    %cst_5 = arith.constant 0.000000e+00 : f32
    %7 = vector.broadcast %cst_5 : f32 to vector<16x128xf32>
    %8 = arith.maximumf %6, %7 : vector<16x128xf32>
    %9 = arith.truncf %8 : vector<16x128xf32> to vector<16x128xbf16>
    %c0_6 = arith.constant 0 : index
    %c0_7 = arith.constant 0 : index
    %10 = vector.load %arg4[%c0_6, %c0_7] : memref<128x8xbf16, #tpu.memory_space<vmem>>, vector<128x8xbf16>
    %cst_8 = arith.constant dense<0.000000e+00> : vector<16x8xf32>
    %11 = tpu.matmul %9, %10, %cst_8 {dimension_numbers = #tpu.dot_dimension_numbers<[1], [0], [0], [1], [0, 0, 1, 1], [], []>} : vector<16x128xbf16>, vector<128x8xbf16>, vector<16x8xf32> -> vector<16x8xf32>
    %c0_9 = arith.constant 0 : index
    %c0_10 = arith.constant 0 : index
    %12 = vector.load %arg5[%c0_9, %c0_10] : memref<1x8xf32, #tpu.memory_space<vmem>>, vector<1x8xf32>
    %13 = vector.broadcast %12 : vector<1x8xf32> to vector<16x8xf32>
    %14 = arith.addf %11, %13 : vector<16x8xf32>
    %c0_11 = arith.constant 0 : index
    %c0_12 = arith.constant 0 : index
    %15 = vector.load %arg6[%c0_11, %c0_12] : memref<16x8xf32, #tpu.memory_space<vmem>>, vector<16x8xf32>
    tpu.vector_store %arg6[%c0_11, %c0_12], %14 {strides = array<i32>} : memref<16x8xf32, #tpu.memory_space<vmem>>, vector<16x8xf32>,
    return
  }
  func.func @transform_0(%arg0: i32) -> (i32, i32) {
    %c0_i32 = arith.constant 0 : i32
    %c0_i32_0 = arith.constant 0 : i32
    return %arg0, %c0_i32 : i32, i32
  }
  func.func @transform_1(%arg0: i32) -> (i32, i32) {
    %c0_i32 = arith.constant 0 : i32
    %c0_i32_0 = arith.constant 0 : i32
    %c0_i32_1 = arith.constant 0 : i32
    return %c0_i32, %c0_i32_0 : i32, i32
  }
  func.func @transform_2(%arg0: i32) -> (i32, i32) {
    %c0_i32 = arith.constant 0 : i32
    %c0_i32_0 = arith.constant 0 : i32
    %c0_i32_1 = arith.constant 0 : i32
    return %c0_i32, %c0_i32_0 : i32, i32
  }
  func.func @transform_3(%arg0: i32) -> (i32, i32) {
    %c0_i32 = arith.constant 0 : i32
    %c0_i32_0 = arith.constant 0 : i32
    %c0_i32_1 = arith.constant 0 : i32
    return %c0_i32, %c0_i32_0 : i32, i32
  }
  func.func @transform_4(%arg0: i32) -> (i32, i32) {
    %c0_i32 = arith.constant 0 : i32
    %c0_i32_0 = arith.constant 0 : i32
    %c0_i32_1 = arith.constant 0 : i32
    return %c0_i32, %c0_i32_0 : i32, i32
  }
  func.func @transform_5(%arg0: i32) -> (i32, i32) {
    %c0_i32 = arith.constant 0 : i32
    %c0_i32_0 = arith.constant 0 : i32
    return %arg0, %c0_i32 : i32, i32
  }
}

</mosaic_0001>

<llo_original>
// kernel: tpu_custom_call.1
$region0: #{tpu_custom_call.1}
  #allocation0 [shape = 'u32[]', space=smem, size = 0x4, offset = 0x4, fixed_abs, tag = 'smem constant byte address 0x4 - core index']
  #allocation1 [shape = 'u32[144,128]{1,0:T(1,128)}', space=vmem, size = 0x12000, scoped, tag = 'internal scratch']
  %s0 = inlined_call_operand.vmem [shape: f32[16,32], index: 0, kind: input, shape index: {}]
  %s1 = inlined_call_operand.vmem [shape: bf16[32,128], index: 1, kind: input, shape index: {}]
  %s2 = inlined_call_operand.vmem [shape: f32[1,128], index: 2, kind: input, shape index: {}]
  %s3 = inlined_call_operand.vmem [shape: bf16[128,8], index: 3, kind: input, shape index: {}]
  %s4 = inlined_call_operand.vmem [shape: f32[1,8], index: 4, kind: input, shape index: {}]
  %s5 = inlined_call_operand.vmem [shape: f32[16,8], index: 5, kind: output, shape index: {}]
  %s6 = sld [smem:[#allocation0]]
  $region30: #{tpu_custom_call.1} parent=0
    _
  %s8 = ssub.s32 1, %s6
  %s9 = scalar_select 0, %s8, %s6
  // Predicated region
  $region2: #{tpu_custom_call.1} parent=0 // pred_check
    _
  $region3: #{tpu_custom_call.1} parent=0 // pred_check_branch
    %11 = sbr.rel (0) target = $region5
  $region4: #{tpu_custom_call.1} parent=0 // pred_region
    _
  $region5: #{tpu_custom_call.1} parent=0 // pred_fallthru
    _
  // Predicated region
  $region6: #{tpu_custom_call.1} parent=0 // pred_check
    _
  $region7: #{tpu_custom_call.1} parent=0 // pred_check_branch
    %13 = sbr.rel (0) target = $region9
  $region8: #{tpu_custom_call.1} parent=0 // pred_region
    _
  $region9: #{tpu_custom_call.1} parent=0 // pred_fallthru
    _
  // Predicated region
  $region10: #{tpu_custom_call.1} parent=0 // pred_check
    _
  $region11: #{tpu_custom_call.1} parent=0 // pred_check_branch
    %15 = sbr.rel (0) target = $region13
  $region12: #{tpu_custom_call.1} parent=0 // pred_region
    _
  $region13: #{tpu_custom_call.1} parent=0 // pred_fallthru
    _
  // Predicated region
  $region14: #{tpu_custom_call.1} parent=0 // pred_check
    _
  $region15: #{tpu_custom_call.1} parent=0 // pred_check_branch
    %17 = sbr.rel (0) target = $region17
  $region16: #{tpu_custom_call.1} parent=0 // pred_region
    _
  $region17: #{tpu_custom_call.1} parent=0 // pred_fallthru
    _
  // Predicated region
  $region18: #{tpu_custom_call.1} parent=0 // pred_check
    _
  $region19: #{tpu_custom_call.1} parent=0 // pred_check_branch
    %19 = sbr.rel (0) target = $region21
  $region20: #{tpu_custom_call.1} parent=0 // pred_region
    _
  $region21: #{tpu_custom_call.1} parent=0 // pred_fallthru
    _
  %v21 = vld [vmem:[%s0] sm:$0xff]
  %v22 = vld [vmem:[%s0 + $0x8] sm:$0xff]
  %v23 = vpack.c.bf16 %v22, %v21
  %v24 = vld [vmem:[%s1] sm:$0xf]
  %v25 = vld [vmem:[%s1 + $0x4] sm:$0xf]
  %v26 = vld [vmem:[%s1 + $0x8] sm:$0xf]
  %v27 = vld [vmem:[%s1 + $0xc] sm:$0xf]
  %v28 = vld [vmem:[%s2] sm:$0x1]
  %v30 = vlaneseq
  %v31 = vshrl.u32 %v30, 7
  %v32 = vsub.s32 0, %v31
  %v33 = vrot.slane %v28, %v32
  %v39 = vunpack.c.l.b16 %v24
  %v40 = vunpack.c.l.b16 %v25
  %v41 = vunpack.c.l.b16 %v26
  %v42 = vunpack.c.l.b16 %v27
  %v43 = vpack.c.b16 %v40, %v39
  %v44 = vpack.c.b16 %v42, %v41
  %vm47 = vcmask 261120
  %v49 = vsel %vm47, %v23, 0
  %51 = vmatprep.subr.bf16.mxu0 0
  %52 = vmatpush1.bf16.msra.mxu0 %v43
  %53 = vmatprep.subr.bf16.mxu0 0
  %54 = vmatpush1.bf16.msra.mxu0 %v44
  %55 = vmatprep.subr.bf16.mxu0 0
  %56 = vmatpush1.bf16.msra.mxu0 0
  %57 = vmatprep.subr.bf16.mxu0 0
  %58 = vmatpush1.bf16.msra.mxu0 0
  %59 = vmatprep.subr.bf16.mxu0 0
  %60 = vmatpush1.bf16.msra.mxu0 0
  %61 = vmatprep.subr.bf16.mxu0 0
  %62 = vmatpush1.bf16.msra.mxu0 0
  %63 = vmatprep.subr.bf16.mxu0 0
  %64 = vmatpush1.bf16.msra.mxu0 0
  %65 = vmatprep.subr.bf16.mxu0 0
  %66 = vmatpush1.bf16.msra.mxu0 0
  %67 = vmatprep.subr.bf16.mxu0 0
  %68 = vmatpush1.bf16.msra.mxu0 0
  %69 = vmatprep.subr.bf16.mxu0 0
  %70 = vmatpush1.bf16.msra.mxu0 0
  %71 = vmatprep.subr.bf16.mxu0 0
  %72 = vmatpush1.bf16.msra.mxu0 0
  %73 = vmatprep.subr.bf16.mxu0 0
  %74 = vmatpush1.bf16.msra.mxu0 0
  %75 = vmatprep.subr.bf16.mxu0 0
  %76 = vmatpush1.bf16.msra.mxu0 0
  %77 = vmatprep.subr.bf16.mxu0 0
  %78 = vmatpush1.bf16.msra.mxu0 0
  %79 = vmatprep.subr.bf16.mxu0 0
  %80 = vmatpush1.bf16.msra.mxu0 0
  %81 = vmatprep.subr.bf16.mxu0 0
  %82 = vmatpush1.bf16.msra.mxu0 0
  %83 = vmatprep.mubr.bf16.mxu0 0
  %84 = vmatmul.mubr.bf16.gmra.mrb[0].mxu0 %v49
  %v85 = vpop.f32.mrb[0].mxu0
  %v86 = vadd.f32 %v33, %v85
  %v87 = vpop.f32.mrb[0].mxu0
  %v88 = vpop.f32.mrb[0].mxu0
  %v89 = vadd.f32 %v33, %v88
  %v90 = vpop.f32.mrb[0].mxu0
  %91 = vdwg.mxu0
  %v92 = vmax.f32 %v86, 0.0
  %v93 = vmax.f32 %v89, 0.0
  %v94 = vpack.c.bf16 %v93, %v92
  %v95 = vld [vmem:[%s3] sm:$0xf]
  %v96 = vld [vmem:[%s3 + $0x4] sm:$0xf]
  %v97 = vld [vmem:[%s3 + $0x8] sm:$0xf]
  %v98 = vld [vmem:[%s3 + $0xc] sm:$0xf]
  %v99 = vld [vmem:[%s3 + $0x10] sm:$0xf]
  %v100 = vld [vmem:[%s3 + $0x14] sm:$0xf]
  %v101 = vld [vmem:[%s3 + $0x18] sm:$0xf]
  %v102 = vld [vmem:[%s3 + $0x1c] sm:$0xf]
  %v103 = vld [vmem:[%s3 + $0x20] sm:$0xf]
  %v104 = vld [vmem:[%s3 + $0x24] sm:$0xf]
  %v105 = vld [vmem:[%s3 + $0x28] sm:$0xf]
  %v106 = vld [vmem:[%s3 + $0x2c] sm:$0xf]
  %v107 = vld [vmem:[%s3 + $0x30] sm:$0xf]
  %v108 = vld [vmem:[%s3 + $0x34] sm:$0xf]
  %v109 = vld [vmem:[%s3 + $0x38] sm:$0xf]
  %v110 = vld [vmem:[%s3 + $0x3c] sm:$0xf]
  %v111 = vld [vmem:[%s4] sm:$0x1]
  %v113 = vlaneseq
  %v114 = vshrl.u32 %v113, 7
  %v115 = vsub.s32 0, %v114
  %v116 = vrot.slane %v111, %v115
  %v134 = vunpack.c.l.b16 %v95
  %v135 = vunpack.c.l.b16 %v96
  %v136 = vunpack.c.l.b16 %v97
  %v137 = vunpack.c.l.b16 %v98
  %v138 = vunpack.c.l.b16 %v99
  %v139 = vunpack.c.l.b16 %v100
  %v140 = vunpack.c.l.b16 %v101
  %v141 = vunpack.c.l.b16 %v102
  %v142 = vunpack.c.l.b16 %v103
  %v143 = vunpack.c.l.b16 %v104
  %v144 = vunpack.c.l.b16 %v105
  %v145 = vunpack.c.l.b16 %v106
  %v146 = vunpack.c.l.b16 %v107
  %v147 = vunpack.c.l.b16 %v108
  %v148 = vunpack.c.l.b16 %v109
  %v149 = vunpack.c.l.b16 %v110
  %v150 = vpack.c.b16 %v135, %v134
  %v151 = vpack.c.b16 %v137, %v136
  %v152 = vpack.c.b16 %v139, %v138
  %v153 = vpack.c.b16 %v141, %v140
  %v154 = vpack.c.b16 %v143, %v142
  %v155 = vpack.c.b16 %v145, %v144
  %v156 = vpack.c.b16 %v147, %v146
  %v157 = vpack.c.b16 %v149, %v148
  %166 = vmatprep.subr.bf16.mxu0 0
  %167 = vmatpush1.bf16.msra.mxu0 %v150
  %168 = vmatprep.subr.bf16.mxu0 0
  %169 = vmatpush1.bf16.msra.mxu0 %v151
  %170 = vmatprep.subr.bf16.mxu0 0
  %171 = vmatpush1.bf16.msra.mxu0 %v152
  %172 = vmatprep.subr.bf16.mxu0 0
  %173 = vmatpush1.bf16.msra.mxu0 %v153
  %174 = vmatprep.subr.bf16.mxu0 0
  %175 = vmatpush1.bf16.msra.mxu0 %v154
  %176 = vmatprep.subr.bf16.mxu0 0
  %177 = vmatpush1.bf16.msra.mxu0 %v155
  %178 = vmatprep.subr.bf16.mxu0 0
  %179 = vmatpush1.bf16.msra.mxu0 %v156
  %180 = vmatprep.subr.bf16.mxu0 0
  %181 = vmatpush1.bf16.msra.mxu0 %v157
  %182 = vmatprep.subr.bf16.mxu0 0
  %183 = vmatpush1.bf16.msra.mxu0 0
  %184 = vmatprep.subr.bf16.mxu0 0
  %185 = vmatpush1.bf16.msra.mxu0 0
  %186 = vmatprep.subr.bf16.mxu0 0
  %187 = vmatpush1.bf16.msra.mxu0 0
  %188 = vmatprep.subr.bf16.mxu0 0
  %189 = vmatpush1.bf16.msra.mxu0 0
  %190 = vmatprep.subr.bf16.mxu0 0
  %191 = vmatpush1.bf16.msra.mxu0 0
  %192 = vmatprep.subr.bf16.mxu0 0
  %193 = vmatpush1.bf16.msra.mxu0 0
  %194 = vmatprep.subr.bf16.mxu0 0
  %195 = vmatpush1.bf16.msra.mxu0 0
  %196 = vmatprep.subr.bf16.mxu0 0
  %197 = vmatpush1.bf16.msra.mxu0 0
  %198 = vmatprep.mubr.bf16.mxu0 0
  %199 = vmatmul.mubr.bf16.gmra.mrb[0].mxu0 %v94
  %v200 = vpop.f32.mrb[0].mxu0
  %v201 = vadd.f32 %v116, %v200
  %v202 = vpop.f32.mrb[0].mxu0
  %v203 = vpop.f32.mrb[0].mxu0
  %v204 = vadd.f32 %v116, %v203
  %v205 = vpop.f32.mrb[0].mxu0
  %206 = vdwg.mxu0
  %vm207 = vcmask 64512
  %208 = vst.msk [vmem:[%s5] sm:$0xff] %vm207, %v201
  %209 = vst.msk [vmem:[%s5 + $0x8] sm:$0xff] %vm207, %v204
  // Predicated region
  $region22: #{tpu_custom_call.1} parent=0 // pred_check
    _
  $region23: #{tpu_custom_call.1} parent=0 // pred_check_branch
    %211 = sbr.rel (0) target = $region25
  $region24: #{tpu_custom_call.1} parent=0 // pred_region
    _
  $region25: #{tpu_custom_call.1} parent=0 // pred_fallthru
    _
  // Predicated region
  $region26: #{tpu_custom_call.1} parent=0 // pred_check
    _
  $region27: #{tpu_custom_call.1} parent=0 // pred_check_branch
    %213 = sbr.rel (0) target = $region29
  $region28: #{tpu_custom_call.1} parent=0 // pred_region
    _
  $region29: #{tpu_custom_call.1} parent=0 // pred_fallthru
    _

</llo_original>
